<compile_context>
chip_gen: v5e
topology: v5e:2x2
jax: 0.10.0
libtpu: 0.0.40
codegen_flags: <defaults>
</compile_context>

<pallas_src>
import functools

import jax
import jax.numpy as jnp
from jax import lax
from jax.experimental import pallas as pl
from jax.experimental.pallas import tpu as pltpu

LANES = 128
SUBLANES = 8
MAX_TILE_ROWS = 4096  # (4096, 128) f32 tile = 2 MiB per input per buffer


def _focal_loss_kernel(inp_ref, tgt_ref, out_ref, *, gamma, alpha, eps,
                       tile_rows, rows, binary_targets):
    i = pl.program_id(0)

    x = inp_ref[...].astype(jnp.float32)
    # input = input.clamp(eps, 1 - eps)
    x = jnp.clip(x, eps, 1.0 - eps)

    if binary_targets:
        # targets are exactly {0,1}: 1 transcendental per element.
        tb = tgt_ref[...] != 0
        pt = jnp.where(tb, x, 1.0 - x)
        logpt = jnp.log(pt)
        # nat = -at = -(alpha*t + (1-alpha)*(1-t))
        nat = jnp.where(tb, jnp.float32(-alpha), jnp.float32(alpha - 1.0))
    else:
        # soft-target fallback: logpt = t*log(x) + (1-t)*log(1-x), fused form.
        t = tgt_ref[...].astype(jnp.float32)
        lx = jnp.log(x)
        l1x = jnp.log(1.0 - x)
        logpt = t * (lx - l1x) + l1x
        pt = jnp.exp(logpt)
        # nat = -at, affine in t
        nat = (1.0 - 2.0 * alpha) * t - (1.0 - alpha)

    one_minus_pt = 1.0 - pt
    g_int = int(gamma)
    if float(gamma) == float(g_int) and 0 <= g_int <= 8:
        # integer-gamma fast path: pure VPU multiplies, no EUP pow,
        # no ones_like broadcast (gamma-1 multiplies).
        w = None
        for _ in range(g_int):
            w = one_minus_pt if w is None else w * one_minus_pt
    else:
        # guard against pt marginally > 1 producing NaN for fractional gamma
        w = jnp.maximum(one_minus_pt, 0.0) ** gamma

    # focal_loss = -at * logpt * (1 - pt)**gamma  (negation folded into nat)
    fl = nat * logpt
    if w is not None:
        fl = fl * w

    def partial_sum(v):
        # (tile_rows,128) -> (tile_rows//8, 8, 128): last two dims keep the
        # (8,128) vreg tiling, so this reshape is free; sum(axis=0) is pure
        # VPU adds producing a lane-dense (8,128) partial.
        return jnp.sum(v.reshape(tile_rows // SUBLANES, SUBLANES, LANES),
                       axis=0)

    num_blocks = (rows + tile_rows - 1) // tile_rows
    rem = rows - (num_blocks - 1) * tile_rows  # valid rows in last block
    if rem == tile_rows:
        # grid divides rows evenly: no masking anywhere
        out_ref[...] = partial_sum(fl)
    else:
        # masking only on the final (partial) block; earlier blocks pay nothing
        @pl.when(i < num_blocks - 1)
        def _():
            out_ref[...] = partial_sum(fl)

        @pl.when(i == num_blocks - 1)
        def _():
            ridx = lax.broadcasted_iota(jnp.int32, fl.shape, 0)
            out_ref[...] = partial_sum(jnp.where(ridx < rem, fl, 0.0))


def _focal_loss_jnp(x, t, gamma, alpha, eps):
    """Reference formula (also used for the tiny <1024-element tail)."""
    x = jnp.clip(x.astype(jnp.float32), eps, 1.0 - eps)
    t = t.astype(jnp.float32)
    logpt = t * jnp.log(x) + (1.0 - t) * jnp.log(1.0 - x)
    pt = jnp.exp(logpt)
    at = alpha * t + (1.0 - alpha) * (1.0 - t)
    return jnp.sum(-at * logpt * (1.0 - pt) ** gamma)


def focal_loss(inputs, targets, gamma=2.0, alpha=0.25, eps=1e-7,
               binary_targets=None, max_tile_rows=MAX_TILE_ROWS):
    """Pallas TPU focal loss; matches FocalLoss.forward (returns scalar sum).

    Inputs/targets are streamed in their native dtype (pass bf16/int8 targets
    directly; do NOT astype in the caller).  binary_targets=None auto-enables
    the 1-transcendental fast path for bool/integer target dtypes; pass True
    explicitly if float targets are known to be exactly {0,1}.
    """
    assert inputs.shape == targets.shape
    if binary_targets is None:
        binary_targets = (targets.dtype == jnp.bool_ or
                          jnp.issubdtype(targets.dtype, jnp.integer))

    x = jnp.ravel(inputs)
    t = jnp.ravel(targets)
    n = x.shape[0]

    vreg = SUBLANES * LANES
    n_main = (n // vreg) * vreg

    total = jnp.float32(0.0)
    if n_main != n:
        # <=1023-element ragged tail: tiny jnp epilogue instead of a full-array
        # pad (which would double HBM traffic before the kernel even starts).
        total = total + _focal_loss_jnp(x[n_main:], t[n_main:],
                                        gamma, alpha, eps)
    if n_main == 0:
        return total
    if n_main != n:
        x = x[:n_main]
        t = t[:n_main]

    rows = n_main // LANES  # always a multiple of 8
    x2 = x.reshape(rows, LANES)
    t2 = t.reshape(rows, LANES)

    tile_rows = min(int(max_tile_rows), rows)
    tile_rows = max(SUBLANES, (tile_rows // SUBLANES) * SUBLANES)
    num_blocks = pl.cdiv(rows, tile_rows)

    kernel = functools.partial(
        _focal_loss_kernel,
        gamma=float(gamma), alpha=float(alpha), eps=float(eps),
        tile_rows=int(tile_rows), rows=int(rows),
        binary_targets=bool(binary_targets))

    in_spec = pl.BlockSpec((tile_rows, LANES), lambda i: (i, 0))

    # Explicit scoped-VMEM budget: double-buffered inputs + headroom for the
    # elementwise f32 intermediates of one tile (portable across v5e's 16 MiB
    # default and v7x's 64 MiB physical VMEM).
    tile_f32 = tile_rows * LANES * 4
    in_buf_bytes = 2 * tile_rows * LANES * (x2.dtype.itemsize +
                                            t2.dtype.itemsize)
    vmem_limit = int(min(64 * 1024 * 1024,
                         max(32 * 1024 * 1024,
                             in_buf_bytes + 12 * tile_f32 + (4 << 20))))

    n_k = rows * LANES
    cost = pl.CostEstimate(
        flops=int(20 * n_k),
        transcendentals=int((1 if binary_targets else 3) * n_k),
        bytes_accessed=int(n_k * (x2.dtype.itemsize + t2.dtype.itemsize)
                           + num_blocks * SUBLANES * LANES * 4))

    partials = pl.pallas_call(
        kernel,
        out_shape=jax.ShapeDtypeStruct((num_blocks * SUBLANES, LANES),
                                       jnp.float32),
        grid_spec=pltpu.PrefetchScalarGridSpec(
            num_scalar_prefetch=0,
            grid=(num_blocks,),
            in_specs=[in_spec, in_spec],
            out_specs=pl.BlockSpec((SUBLANES, LANES), lambda i: (i, 0)),
        ),
        compiler_params=pltpu.CompilerParams(
            dimension_semantics=("parallel",),
            vmem_limit_bytes=vmem_limit),
        cost_estimate=cost,
    )(x2, t2)

    # Tiny final reduction (num_blocks * 8 * 128 f32) outside the kernel.
    return total + jnp.sum(partials)


if __name__ == "__main__":
    key = jax.random.PRNGKey(0)
    k1, k2, k3, k4, k5, k6 = jax.random.split(key, 6)

    B, C, H, W = 2, 4, 16, 16  # NCHW, like PyTorch conv outputs
    # predictions in (0,1) (e.g. post-sigmoid), binary targets as floats
    x = jax.random.uniform(k1, (B, C, H, W), dtype=jnp.float32)
    t = (jax.random.uniform(k2, (B, C, H, W)) > 0.5).astype(jnp.float32)
    ref = _focal_loss_ref = _focal_loss_jnp(x, t, 2.0, 0.25, 1e-7)

    # 1) default (soft-target) path
    loss = jax.block_until_ready(focal_loss(x, t))
    assert jnp.allclose(loss, ref, rtol=1e-5, atol=1e-4), (loss, ref)

    # 2) binary-target fast path (1 transcendental/elem) on the same data
    loss_b = jax.block_until_ready(focal_loss(x, t, binary_targets=True))
    assert jnp.allclose(loss_b, ref, rtol=1e-5, atol=1e-4), (loss_b, ref)

    # 3) ragged numel (2*3*13*15 = 1170): exercises the jnp tail epilogue
    x2 = jax.random.uniform(k3, (2, 3, 13, 15), dtype=jnp.float32)
    t2 = (jax.random.uniform(k4, (2, 3, 13, 15)) > 0.5).astype(jnp.float32)
    loss2 = jax.block_until_ready(focal_loss(x2, t2))
    ref2 = _focal_loss_jnp(x2, t2, 2.0, 0.25, 1e-7)
    assert jnp.allclose(loss2, ref2, rtol=1e-5, atol=1e-4), (loss2, ref2)

    # 4) partial last grid block (rows=24, tile=16): exercises the pl.when mask
    x3 = jax.random.uniform(k5, (24 * 128,), dtype=jnp.float32)
    t3 = (jax.random.uniform(k6, (24 * 128,)) > 0.5).astype(jnp.float32)
    loss3 = jax.block_until_ready(focal_loss(x3, t3, max_tile_rows=16))
    ref3 = _focal_loss_jnp(x3, t3, 2.0, 0.25, 1e-7)
    assert jnp.allclose(loss3, ref3, rtol=1e-5, atol=1e-4), (loss3, ref3)

    # 5) fractional gamma (EUP pow fallback path)
    loss4 = jax.block_until_ready(focal_loss(x, t, gamma=1.5))
    ref4 = _focal_loss_jnp(x, t, 1.5, 0.25, 1e-7)
    assert jnp.allclose(loss4, ref4, rtol=1e-5, atol=1e-4), (loss4, ref4)

    print("KERNEL_OK")
</pallas_src>

<mosaic_0001>
module attributes {stable_mosaic.version = 11 : i64} {
  func.func @_focal_loss_kernel(%arg0: i32, %arg1: memref<16x128xf32, #tpu.memory_space<vmem>>, %arg2: memref<16x128xf32, #tpu.memory_space<vmem>>, %arg3: memref<8x128xf32, #tpu.memory_space<vmem>>) attributes {dimension_semantics = [#tpu.dimension_semantics<parallel>], iteration_bounds = array<i64: 1>, scalar_prefetch = 0 : i64, scratch_operands = 0 : i64, tpu.core_type = #tpu.core_type<tc>, window_params = [{transform_indices = @transform_0, window_bounds = array<i64: 16, 128>}, {transform_indices = @transform_1, window_bounds = array<i64: 16, 128>}, {transform_indices = @transform_2, window_bounds = array<i64: 8, 128>}]} {
    %c0 = arith.constant 0 : index
    %c0_0 = arith.constant 0 : index
    %0 = vector.load %arg1[%c0, %c0_0] : memref<16x128xf32, #tpu.memory_space<vmem>>, vector<16x128xf32>
    %cst = arith.constant 1.000000e-07 : f32
    %cst_1 = arith.constant 0.99999988 : f32
    %1 = vector.broadcast %cst : f32 to vector<16x128xf32>
    %2 = arith.maximumf %1, %0 : vector<16x128xf32>
    %3 = vector.broadcast %cst_1 : f32 to vector<16x128xf32>
    %4 = arith.minimumf %3, %2 : vector<16x128xf32>
    %c0_2 = arith.constant 0 : index
    %c0_3 = arith.constant 0 : index
    %5 = vector.load %arg2[%c0_2, %c0_3] : memref<16x128xf32, #tpu.memory_space<vmem>>, vector<16x128xf32>
    %6 = math.log %4 : vector<16x128xf32>
    %cst_4 = arith.constant 1.000000e+00 : f32
    %7 = vector.broadcast %cst_4 : f32 to vector<16x128xf32>
    %8 = arith.subf %7, %4 : vector<16x128xf32>
    %9 = math.log %8 : vector<16x128xf32>
    %10 = arith.subf %6, %9 : vector<16x128xf32>
    %11 = arith.mulf %5, %10 : vector<16x128xf32>
    %12 = arith.addf %11, %9 : vector<16x128xf32>
    %13 = math.exp %12 : vector<16x128xf32>
    %cst_5 = arith.constant 5.000000e-01 : f32
    %14 = vector.broadcast %cst_5 : f32 to vector<16x128xf32>
    %15 = arith.mulf %14, %5 : vector<16x128xf32>
    %cst_6 = arith.constant 7.500000e-01 : f32
    %16 = vector.broadcast %cst_6 : f32 to vector<16x128xf32>
    %17 = arith.subf %15, %16 : vector<16x128xf32>
    %cst_7 = arith.constant 1.000000e+00 : f32
    %18 = vector.broadcast %cst_7 : f32 to vector<16x128xf32>
    %19 = arith.subf %18, %13 : vector<16x128xf32>
    %20 = arith.mulf %19, %19 : vector<16x128xf32>
    %21 = arith.mulf %17, %12 : vector<16x128xf32>
    %22 = arith.mulf %21, %20 : vector<16x128xf32>
    %23 = vector.shape_cast %22 : vector<16x128xf32> to vector<2x8x128xf32>
    %cst_8 = arith.constant dense<0.000000e+00> : vector<8x128xf32>
    %24 = vector.multi_reduction <add>, %23, %cst_8 [0] : vector<2x8x128xf32> to vector<8x128xf32>
    %c0_9 = arith.constant 0 : index
    %c0_10 = arith.constant 0 : index
    %25 = vector.load %arg3[%c0_9, %c0_10] : memref<8x128xf32, #tpu.memory_space<vmem>>, vector<8x128xf32>
    tpu.vector_store %arg3[%c0_9, %c0_10], %24 {strides = array<i32>} : memref<8x128xf32, #tpu.memory_space<vmem>>, vector<8x128xf32>,
    return
  }
  func.func @transform_0(%arg0: i32) -> (i32, i32) {
    %c0_i32 = arith.constant 0 : i32
    %c0_i32_0 = arith.constant 0 : i32
    return %arg0, %c0_i32 : i32, i32
  }
  func.func @transform_1(%arg0: i32) -> (i32, i32) {
    %c0_i32 = arith.constant 0 : i32
    %c0_i32_0 = arith.constant 0 : i32
    return %arg0, %c0_i32 : i32, i32
  }
  func.func @transform_2(%arg0: i32) -> (i32, i32) {
    %c0_i32 = arith.constant 0 : i32
    %c0_i32_0 = arith.constant 0 : i32
    return %arg0, %c0_i32 : i32, i32
  }
}

</mosaic_0001>

<llo_original>
// kernel: tpu_custom_call.1
$region0: #{tpu_custom_call.1}
  #allocation0 [shape = 'u32[]', space=smem, size = 0x4, offset = 0x4, fixed_abs, tag = 'smem constant byte address 0x4 - core index']
  #allocation1 [shape = 'u32[72,128]{1,0:T(1,128)}', space=vmem, size = 0x9000, scoped, tag = 'internal scratch']
  %s0 = inlined_call_operand.hbm [shape: f32[16,128], index: 0, kind: input, shape index: {}]
  %s1 = inlined_call_operand.hbm [shape: f32[16,128], index: 1, kind: input, shape index: {}]
  %s2 = inlined_call_operand.hbm [shape: f32[8,128], index: 2, kind: output, shape index: {}]
  %s3 = sld [smem:[#allocation0]]
  $region26: #{tpu_custom_call.1} parent=0
    _
  %s5 = ssub.s32 1, %s3
  %s6 = scalar_select 0, %s5, %s3
  $region1: #{tpu_custom_call.1} parent=0
    #allocation2 [shape = 'u8[8192]{0}', space=vmem, size = 0x2000, scoped, tag = 'input window, operand 0, single buffered']
    #allocation3 [shape = 's32[1]{0}', space=sflag, size = 0x4, scoped, tag = 'scoped memory for tpu_custom_call.1']
    #allocation4 [shape = 's32[1]{0}', space=sflag, size = 0x4, scoped, tag = 'scoped memory for tpu_custom_call.1']
    #allocation5 [shape = 'u8[8192]{0}', space=vmem, size = 0x2000, scoped, tag = 'input window, operand 1, single buffered']
    #allocation6 [shape = 's32[1]{0}', space=sflag, size = 0x4, scoped, tag = 'scoped memory for tpu_custom_call.1']
    #allocation7 [shape = 'u8[4096]{0}', space=vmem, size = 0x1000, scoped, tag = 'output window, operand 0, single buffered']
    %7 = vsyncpa [#allocation3], 0
    %8 = vsyncpa [#allocation6], 0
    %9 = vsyncpa [#allocation4], 0
    // Predicated region
    $region2: #{tpu_custom_call.1} parent=1 // pred_check
      _
    $region3: #{tpu_custom_call.1} parent=1 // pred_check_branch
      %11 = sbr.rel (0) target = $region5
    $region4: #{tpu_custom_call.1} parent=1 // pred_region
      %13 = vsyncadd [#allocation3], 0
      %s14 = sshll.u32 %s0, 4
      %s15 = int_to_ptr.hbm [resolvable:$true] %s14
      %s16 = sshll.u32 [#allocation2], 4
      %s17 = int_to_ptr.vmem [resolvable:$true] %s16
      %22 = dma.hbm_to_vmem [thread:$0]  %s15, 256, %s17, [#allocation3], 128, 128, 8
    $region5: #{tpu_custom_call.1} parent=1 // pred_fallthru
      _
    // Predicated region
    $region6: #{tpu_custom_call.1} parent=1 // pred_check
      _
    $region7: #{tpu_custom_call.1} parent=1 // pred_check_branch
      %24 = sbr.rel (0) target = $region9
    $region8: #{tpu_custom_call.1} parent=1 // pred_region
      %26 = vsyncadd [#allocation6], 0
      %s27 = sshll.u32 %s1, 4
      %s28 = int_to_ptr.hbm [resolvable:$true] %s27
      %s29 = sshll.u32 [#allocation5], 4
      %s30 = int_to_ptr.vmem [resolvable:$true] %s29
      %35 = dma.hbm_to_vmem [thread:$0]  %s28, 256, %s30, [#allocation6], 128, 128, 8
    $region9: #{tpu_custom_call.1} parent=1 // pred_fallthru
      _
    // Predicated region
    $region10: #{tpu_custom_call.1} parent=1 // pred_check
      _
    $region11: #{tpu_custom_call.1} parent=1 // pred_check_branch
      %37 = sbr.rel (0) target = $region13
    $region12: #{tpu_custom_call.1} parent=1 // pred_region
      %39 = dma.done [#allocation3], 256
    $region13: #{tpu_custom_call.1} parent=1 // pred_fallthru
      _
    // Predicated region
    $region14: #{tpu_custom_call.1} parent=1 // pred_check
      _
    $region15: #{tpu_custom_call.1} parent=1 // pred_check_branch
      %41 = sbr.rel (0) target = $region17
    $region16: #{tpu_custom_call.1} parent=1 // pred_region
      %43 = dma.done [#allocation6], 256
    $region17: #{tpu_custom_call.1} parent=1 // pred_fallthru
      _
    %v44 = vld [vmem:[#allocation2] sm:$0xff]
    %v45 = vld [vmem:[#allocation2 + $0x8] sm:$0xff]
    %v46 = vmax.f32 %v44, 1e-07
    %v47 = vmax.f32 %v45, 1e-07
    %v48 = vmin.f32 %v46, 0.9999999
    %v49 = vmin.f32 %v47, 0.9999999
    %v50 = vld [vmem:[#allocation5] sm:$0xff]
    %v51 = vld [vmem:[#allocation5 + $0x8] sm:$0xff]
    %v52 = vlog2.pop %v48
    %v53 = vmul.f32 %v52, 0.6931472
    %v54 = vlog2.pop %v49
    %v55 = vmul.f32 %v54, 0.6931472
    %v56 = vsub.f32 1.0, %v48
    %v57 = vsub.f32 1.0, %v49
    %v58 = vlog2.pop %v56
    %v59 = vmul.f32 %v58, 0.6931472
    %v60 = vlog2.pop %v57
    %v61 = vmul.f32 %v60, 0.6931472
    %v62 = vsub.f32 %v53, %v59
    %v63 = vsub.f32 %v55, %v61
    %v64 = vmul.f32 %v50, %v62
    %v65 = vmul.f32 %v51, %v63
    %v66 = vadd.f32 %v64, %v59
    %v67 = vadd.f32 %v65, %v61
    %v68 = vmul.f32 %v66, 1.442695
    %v69 = vpow.pop %v68
    %v70 = vmul.f32 %v67, 1.442695
    %v71 = vpow.pop %v70
    %v72 = vmul.f32 %v50, 0.5
    %v73 = vmul.f32 %v51, 0.5
    %v74 = vsub.f32 %v72, 0.75
    %v75 = vsub.f32 %v73, 0.75
    %v76 = vsub.f32 1.0, %v69
    %v77 = vsub.f32 1.0, %v71
    %v78 = vmul.f32 %v76, %v76
    %v79 = vmul.f32 %v77, %v77
    %v80 = vmul.f32 %v74, %v66
    %v81 = vmul.f32 %v75, %v67
    %v82 = vmul.f32 %v80, %v78
    %v83 = vmul.f32 %v81, %v79
    %v84 = vadd.f32 %v82, %v83
    %85 = vst [vmem:[#allocation7] sm:$0xff] %v84
    // Predicated region
    $region18: #{tpu_custom_call.1} parent=1 // pred_check
      _
    $region19: #{tpu_custom_call.1} parent=1 // pred_check_branch
      %87 = sbr.rel (0) target = $region21
    $region20: #{tpu_custom_call.1} parent=1 // pred_region
      %89 = vsyncadd [#allocation4], 0
      %s91 = sshll.u32 [#allocation7], 4
      %s92 = int_to_ptr.vmem [resolvable:$true] %s91
      %s93 = sshll.u32 %s2, 4
      %s94 = int_to_ptr.hbm [resolvable:$true] %s93
      %96 = dma.vmem_to_hbm [thread:$0]  %s92, 128, %s94, [#allocation4]
    $region21: #{tpu_custom_call.1} parent=1 // pred_fallthru
      _
    // Predicated region
    $region22: #{tpu_custom_call.1} parent=1 // pred_check
      _
    $region23: #{tpu_custom_call.1} parent=1 // pred_check_branch
      %98 = sbr.rel (0) target = $region25
    $region24: #{tpu_custom_call.1} parent=1 // pred_region
      %100 = dma.done [#allocation4], 128
    $region25: #{tpu_custom_call.1} parent=1 // pred_fallthru
      _
    %101 = vsyncpa [#allocation3], 1
    %102 = vsyncpa [#allocation6], 1
    %103 = vsyncpa [#allocation4], 1

</llo_original>
